<compile_context>
chip_gen: v5e
topology: v5e:2x2
jax: 0.10.0
libtpu: 0.0.40
codegen_flags: <defaults>
</compile_context>

<pallas_src>
import jax
import jax.numpy as jnp
from jax.experimental import pallas as pl
from jax.experimental.pallas import tpu as pltpu


# -----------------------------------------------------------------------------
# Path 1: token table resident in VMEM (small-vocab fast path).
# -----------------------------------------------------------------------------
def _clip_embedding_vmem_kernel(tok_ids_ref,   # SMEM (B*S,) int32   (scalar prefetch)
                                table_ref,     # VMEM (V, D) resident (const index_map)
                                pos_ref,       # VMEM (S, D) resident (const index_map)
                                out_ref,       # VMEM (1, S, D)
                                rows_buf):     # VMEM (S, D) scratch
    b = pl.program_id(0)
    seq = pos_ref.shape[0]

    # Gather the S rows for this batch element with in-kernel dynamic-slice loads
    # from the resident table: no HBM DMAs, no per-row descriptor overhead.
    @pl.loop(0, seq)
    def _(s):
        tok = tok_ids_ref[b * seq + s]
        rows_buf[pl.ds(s, 1), :] = table_ref[pl.ds(tok, 1), :]

    # One dense vectorized add + store for the whole (S, D) block.
    out_ref[0] = (rows_buf[...] + pos_ref[...]).astype(out_ref.dtype)


# -----------------------------------------------------------------------------
# Path 2: token table stays in HBM; per-row DMA gather, double-buffered across
# the batch grid axis.
# -----------------------------------------------------------------------------
def _clip_embedding_hbm_kernel(tok_ids_ref,    # SMEM (B*S,) int32   (scalar prefetch)
                               table_hbm,      # HBM  (V, D)         (memory_space=ANY)
                               pos_ref,        # VMEM (S, D) resident
                               out_ref,        # VMEM (1, S, D)
                               rows_buf,       # VMEM (2, S, D) double buffer
                               sems):          # DMA sems, one per slot: (2,)
    b = pl.program_id(0)
    nb = pl.num_programs(0)
    seq = pos_ref.shape[0]
    slot = b % 2

    def issue_gathers(batch, to_slot):
        # One row DMA per token; all `seq` copies of a batch element are in flight
        # together and signal the slot's shared semaphore (all copies are the same
        # size, so one wait per issued copy drains it exactly).
        @pl.loop(0, seq)
        def _(s):
            tok = tok_ids_ref[batch * seq + s]
            pltpu.make_async_copy(
                table_hbm.at[pl.ds(tok, 1), :],
                rows_buf.at[to_slot, pl.ds(s, 1), :],
                sems.at[to_slot],
            ).start()

    # Prologue: the very first step has nothing prefetched for it yet.
    @pl.when(b == 0)
    def _():
        issue_gathers(b, slot)

    # Prefetch the NEXT batch element's rows into the other slot BEFORE draining
    # this one, hiding the HBM gather latency behind this step's wait/add/store.
    @pl.when(b + 1 < nb)
    def _():
        issue_gathers(b + 1, 1 - slot)

    # Drain this step's gathers (src is irrelevant for wait; size comes from dst,
    # which matches the issued copies).
    @pl.loop(0, seq)
    def _(s):
        pltpu.make_async_copy(
            table_hbm.at[pl.ds(0, 1), :],
            rows_buf.at[slot, pl.ds(s, 1), :],
            sems.at[slot],
        ).wait()

    out_ref[0] = (rows_buf[slot] + pos_ref[...]).astype(out_ref.dtype)


# -----------------------------------------------------------------------------
# Wrapper
# -----------------------------------------------------------------------------
def clip_embedding(tokens, token_embed, position_embed, *,
                   max_vmem_table_bytes=4 * 1024 * 1024):
    """tokens: (B, S) int; token_embed: (V, D); position_embed: (S, D) -> (B, S, D)."""
    B, S = tokens.shape
    V, D = token_embed.shape
    assert position_embed.shape == (S, D), position_embed.shape
    out_dtype = token_embed.dtype

    # Flat 1-D ids -> tight SMEM footprint. Clamp so the row gather can never read OOB.
    tok = jnp.clip(tokens.astype(jnp.int32), 0, V - 1).reshape(B * S)

    table_bytes = V * D * jnp.dtype(token_embed.dtype).itemsize
    use_vmem_table = table_bytes <= max_vmem_table_bytes

    if use_vmem_table:
        kernel = _clip_embedding_vmem_kernel
        in_specs = [
            pl.BlockSpec((V, D), lambda b, ids: (0, 0)),    # resident token table
            pl.BlockSpec((S, D), lambda b, ids: (0, 0)),    # resident positional table
        ]
        scratch_shapes = [pltpu.VMEM((S, D), out_dtype)]
        # No cross-step scratch carry -> batch axis may be split across v7x cores.
        dim_sem = ("parallel",)
    else:
        kernel = _clip_embedding_hbm_kernel
        in_specs = [
            pl.BlockSpec(memory_space=pl.ANY),              # table stays in HBM, never padded/copied
            pl.BlockSpec((S, D), lambda b, ids: (0, 0)),    # resident positional table
        ]
        scratch_shapes = [
            pltpu.VMEM((2, S, D), token_embed.dtype),       # double-buffered gathered rows
            pltpu.SemaphoreType.DMA((2,)),                  # one shared DMA sem per slot
        ]
        # Cross-step prefetch carried in scratch -> batch axis must run sequentially.
        # TODO(synk): for v7x 2-TC parallelism with huge vocabs, add a sequence-chunk
        # "parallel" grid axis on top of this "arbitrary" batch axis.
        dim_sem = ("arbitrary",)

    grid_spec = pltpu.PrefetchScalarGridSpec(
        num_scalar_prefetch=1,                               # token ids -> SMEM
        grid=(B,),
        in_specs=in_specs,
        # Output at its natural (B, S, D) shape: full-extent last-two dims are legal,
        # no padding and no post-slice (no extra HBM traffic).
        out_specs=pl.BlockSpec((1, S, D), lambda b, ids: (b, 0, 0)),
        scratch_shapes=scratch_shapes,
    )

    return pl.pallas_call(
        kernel,
        out_shape=jax.ShapeDtypeStruct((B, S, D), out_dtype),
        grid_spec=grid_spec,
        compiler_params=pltpu.CompilerParams(dimension_semantics=dim_sem),
    )(tok, token_embed, position_embed)


if __name__ == "__main__":
    # Small shapes consistent with the module: batch=2, seq=8, vocab=64, d_model=32.
    B, S, V, D = 2, 8, 64, 32

    key = jax.random.PRNGKey(0)
    k_tok, k_te, k_pe = jax.random.split(key, 3)

    tokens = jax.random.randint(k_tok, (B, S), 0, V, dtype=jnp.int32)
    # nn.Embedding default init is N(0, 1); deterministic synthetic weights.
    token_embed = jax.random.normal(k_te, (V, D), dtype=jnp.float32)
    position_embed = jax.random.normal(k_pe, (S, D), dtype=jnp.float32)

    # Pure-JAX reference (matches PyTorch semantics).
    ref = token_embed[tokens] + position_embed[None, :, :]

    # Fast path: table fits in VMEM (default threshold).
    out_vmem = jax.block_until_ready(clip_embedding(tokens, token_embed, position_embed))
    assert out_vmem.shape == (B, S, D), out_vmem.shape
    assert out_vmem.dtype == jnp.float32
    assert jnp.allclose(out_vmem, ref, atol=1e-5, rtol=1e-5), "VMEM path mismatch"

    # HBM DMA-gather path (what a real 49408x768 CLIP vocab takes): force it here.
    out_hbm = jax.block_until_ready(
        clip_embedding(tokens, token_embed, position_embed, max_vmem_table_bytes=0))
    assert out_hbm.shape == (B, S, D), out_hbm.shape
    assert out_hbm.dtype == jnp.float32
    assert jnp.allclose(out_hbm, ref, atol=1e-5, rtol=1e-5), "HBM path mismatch"

    print("KERNEL_OK")
</pallas_src>

<mosaic_0001>
module attributes {stable_mosaic.version = 11 : i64} {
  func.func @_clip_embedding_vmem_kernel(%arg0: i32, %arg1: memref<16xi32, #tpu.memory_space<smem>>, %arg2: memref<64x32xf32, #tpu.memory_space<vmem>>, %arg3: memref<8x32xf32, #tpu.memory_space<vmem>>, %arg4: memref<1x8x32xf32, #tpu.memory_space<vmem>>, %arg5: memref<8x32xf32, #tpu.memory_space<vmem>>) attributes {dimension_semantics = [#tpu.dimension_semantics<parallel>], iteration_bounds = array<i64: 2>, scalar_prefetch = 1 : i64, scratch_operands = 1 : i64, tpu.core_type = #tpu.core_type<tc>, window_params = [{pipeline_mode = #tpu.pipeline_mode<synchronous>, transform_indices = @transform_0, window_bounds = array<i64: 64, 32>}, {pipeline_mode = #tpu.pipeline_mode<synchronous>, transform_indices = @transform_1, window_bounds = array<i64: 8, 32>}, {transform_indices = @transform_2, window_bounds = array<i64: 1, 8, 32>}]} {
    %c0_i32 = arith.constant 0 : i32
    %c8_i32 = arith.constant 8 : i32
    %0 = arith.addi %c0_i32, %c8_i32 : i32
    %c1_i32 = arith.constant 1 : i32
    scf.for %arg6 = %c0_i32 to %0 step %c1_i32  : i32 {
      %c1_i32_7 = arith.constant 1 : i32
      %7 = arith.muli %arg6, %c1_i32_7 : i32
      %c0_i32_8 = arith.constant 0 : i32
      %8 = arith.addi %c0_i32_8, %7 : i32
      %c8_i32_9 = arith.constant 8 : i32
      %9 = arith.muli %arg0, %c8_i32_9 : i32
      %10 = arith.addi %9, %8 : i32
      %11 = arith.index_cast %10 : i32 to index
      %12 = memref.load %arg1[%11] : memref<16xi32, #tpu.memory_space<smem>>
      %13 = arith.index_cast %12 : i32 to index
      %c0_10 = arith.constant 0 : index
      %14 = vector.load %arg2[%13, %c0_10] : memref<64x32xf32, #tpu.memory_space<vmem>>, vector<1x32xf32>
      %15 = arith.index_cast %8 : i32 to index
      %c0_11 = arith.constant 0 : index
      %16 = vector.load %arg5[%15, %c0_11] : memref<8x32xf32, #tpu.memory_space<vmem>>, vector<1x32xf32>
      tpu.vector_store %arg5[%15, %c0_11], %14 {strides = array<i32>} : memref<8x32xf32, #tpu.memory_space<vmem>>, vector<1x32xf32>,
    }
    %c8_i32_0 = arith.constant 8 : i32
    %c0 = arith.constant 0 : index
    %c0_1 = arith.constant 0 : index
    %1 = vector.load %arg5[%c0, %c0_1] : memref<8x32xf32, #tpu.memory_space<vmem>>, vector<8x32xf32>
    %c0_2 = arith.constant 0 : index
    %c0_3 = arith.constant 0 : index
    %2 = vector.load %arg3[%c0_2, %c0_3] : memref<8x32xf32, #tpu.memory_space<vmem>>, vector<8x32xf32>
    %3 = arith.addf %1, %2 : vector<8x32xf32>
    %c0_4 = arith.constant 0 : index
    %c0_5 = arith.constant 0 : index
    %c0_6 = arith.constant 0 : index
    %4 = vector.load %arg4[%c0_4, %c0_5, %c0_6] : memref<1x8x32xf32, #tpu.memory_space<vmem>>, vector<1x8x32xf32>
    %5 = vector.shape_cast %4 : vector<1x8x32xf32> to vector<8x32xf32>
    %6 = vector.shape_cast %3 : vector<8x32xf32> to vector<1x8x32xf32>
    tpu.vector_store %arg4[%c0_4, %c0_5, %c0_6], %6 {strides = array<i32>} : memref<1x8x32xf32, #tpu.memory_space<vmem>>, vector<1x8x32xf32>,
    return
  }
  func.func @transform_0(%arg0: i32, %arg1: memref<16xi32, #tpu.memory_space<smem>>) -> (i32, i32) {
    %c0_i32 = arith.constant 0 : i32
    %c0_i32_0 = arith.constant 0 : i32
    %c0_i32_1 = arith.constant 0 : i32
    return %c0_i32, %c0_i32_0 : i32, i32
  }
  func.func @transform_1(%arg0: i32, %arg1: memref<16xi32, #tpu.memory_space<smem>>) -> (i32, i32) {
    %c0_i32 = arith.constant 0 : i32
    %c0_i32_0 = arith.constant 0 : i32
    %c0_i32_1 = arith.constant 0 : i32
    return %c0_i32, %c0_i32_0 : i32, i32
  }
  func.func @transform_2(%arg0: i32, %arg1: memref<16xi32, #tpu.memory_space<smem>>) -> (i32, i32, i32) {
    %c0_i32 = arith.constant 0 : i32
    %c0_i32_0 = arith.constant 0 : i32
    %c0_i32_1 = arith.constant 0 : i32
    return %arg0, %c0_i32, %c0_i32_0 : i32, i32, i32
  }
}

</mosaic_0001>

<llo_original>
// kernel: tpu_custom_call.1
$region0: #{tpu_custom_call.1}
  #allocation0 [shape = 'u32[]', space=smem, size = 0x4, offset = 0x4, fixed_abs, tag = 'smem constant byte address 0x4 - core index']
  #allocation1 [shape = 'u32[72,128]{1,0:T(1,128)}', space=vmem, size = 0x9000, scoped, tag = 'internal scratch']
  #allocation2 [shape = 'f32[8,32]{1,0:T(8,128)}', space=vmem, size = 0x1000, scoped, tag = 'scratch operand']
  #allocation3 [shape = 's32[1]{0}', space=sflag, size = 0x4, scoped, tag = 'scoped memory for tpu_custom_call.1']
  #allocation4 [shape = 'u8[512]{0}', space=smem, size = 0x200, scoped, tag = 'prefetched SMEM operand 0']
  %s0 = inlined_call_operand.vmem [shape: s32[16], index: 0, kind: input, shape index: {}]
  %s1 = inlined_call_operand.vmem [shape: f32[64,32], index: 1, kind: input, shape index: {}]
  %s2 = inlined_call_operand.vmem [shape: f32[8,32], index: 2, kind: input, shape index: {}]
  %s3 = inlined_call_operand.hbm [shape: f32[2,8,32], index: 3, kind: output, shape index: {}]
  %s4 = sld [smem:[#allocation0]]
  $region48: #{tpu_custom_call.1} parent=0
    _
  %s6 = ssub.s32 1, %s4
  %s7 = scalar_select 0, %s6, %s4
  %s9 = sshll.u32 %s0, 4
  %s10 = int_to_ptr.vmem [resolvable:$true] %s9
  %12 = dma.vmem_to_smem %s10, 16, [#allocation4], [#allocation3]
  %14 = dma.done [#allocation3], 16
  %15 = sfence
  $region1: #{tpu_custom_call.1} parent=0
    #allocation5 [shape = 'u8[8192]{0}', space=vmem, size = 0x2000, scoped, tag = 'output window, operand 0']
    #allocation6 [shape = 's32[2]{0}', space=sflag, size = 0x8, scoped, tag = 'scoped memory for tpu_custom_call.1']
    %16 = vsyncpa [#allocation6], 0
    %s17 = scalar_lea.sflag [#allocation6], 1
    %18 = vsyncpa %s17, 0
    loop: start=0, step=1, limit=4
    $region2: #{tpu_custom_call.1} parent=1 // loop_pre_header
      _
    $region3: #{tpu_custom_call.1} parent=1 // loop_header
      %s20 = sphi 0, %s24
      %p21 = scmp.ge.s32.totalorder %s20, 4
      %s28 = sphi 0, %s28
      %s30 = sphi 0, %s28
      %s31 = sphi 0, %s30
      %s45 = sphi 0, %s31
      %s49 = sphi 0, %s49
      %s51 = sphi 0, %s49
      %s52 = sphi 0, %s51
      %s66 = sphi 0, %s52
      %s72 = sphi 0, %s74
      %s75 = sphi 0, %s72
      %s76 = sphi 0, %s75
      %s92 = sphi 0, %s76
    $region4: #{tpu_custom_call.1} parent=1 // loop_header_branch
      %23 = sbr.rel (%p21) target = $region8
    $region5: #{tpu_custom_call.1} parent=1 // loop_body
      %s25 = ssub.s32 %s20, 1
      %s26 = ssub.s32 %s20, 2
      %s27 = sadd.s32 %s20, 1
      %s29 = sadd.s32 %s28, 1
      %p32 = scmp.eq.s32.totalorder %s20, 1
      %p33 = scmp.ne.s32.totalorder %s28, %s30
      %p34 = scmp.eq.s32.totalorder %s20, 0
      %p35 = por %p33, %p34
      %p36 = scmp.ne.s32.totalorder %s28, %s30
      %p37 = scmp.eq.s32.totalorder %s25, 1
      %p38 = por %p36, %p37
      %p39 = scmp.ne.s32.totalorder %s30, %s31
      %p40 = scmp.eq.s32.totalorder %s25, 0
      %p41 = por %p39, %p40
      %p42 = scmp.ne.s32.totalorder %s30, %s31
      %p43 = scmp.eq.s32.totalorder %s26, 1
      %p44 = por %p42, %p43
      %p46 = scmp.ne.s32.totalorder %s31, %s45
      %p47 = scmp.eq.s32.totalorder %s26, 0
      %p48 = por %p46, %p47
      %s50 = sadd.s32 %s49, 1
      %p53 = scmp.eq.s32.totalorder %s20, 1
      %p54 = scmp.ne.s32.totalorder %s49, %s51
      %p55 = scmp.eq.s32.totalorder %s20, 0
      %p56 = por %p54, %p55
      %p57 = scmp.ne.s32.totalorder %s49, %s51
      %p58 = scmp.eq.s32.totalorder %s25, 1
      %p59 = por %p57, %p58
      %p60 = scmp.ne.s32.totalorder %s51, %s52
      %p61 = scmp.eq.s32.totalorder %s25, 0
      %p62 = por %p60, %p61
      %p63 = scmp.ne.s32.totalorder %s51, %s52
      %p64 = scmp.eq.s32.totalorder %s26, 1
      %p65 = por %p63, %p64
      %p67 = scmp.ne.s32.totalorder %s52, %s66
      %p68 = scmp.eq.s32.totalorder %s26, 0
      %p69 = por %p67, %p68
      %s70 = ssub.s32 %s20, %s27
      %p71 = scmp.eq.s32.totalorder %s70, 0
      %s73 = sadd.s32 %s72, 1
      %s74 = scalar_select %p71, %s72, %s73
      %p77 = pneg %p71
      %p78 = scmp.eq.s32.totalorder %s20, 1
      %p79 = por %p77, %p78
      %p80 = scmp.ne.s32.totalorder %s72, %s75
      %p81 = scmp.eq.s32.totalorder %s20, 0
      %p82 = por %p80, %p81
      %p83 = scmp.ne.s32.totalorder %s72, %s75
      %p84 = scmp.eq.s32.totalorder %s25, 1
      %p85 = por %p83, %p84
      %p86 = scmp.ne.s32.totalorder %s75, %s76
      %p87 = scmp.eq.s32.totalorder %s25, 0
      %p88 = por %p86, %p87
      %p89 = scmp.ne.s32.totalorder %s75, %s76
      %p90 = scmp.eq.s32.totalorder %s26, 1
      %p91 = por %p89, %p90
      %p93 = scmp.ne.s32.totalorder %s76, %s92
      %p94 = scmp.eq.s32.totalorder %s26, 0
      %p95 = por %p93, %p94
      %p96 = scmp.le.s32.totalorder 1, %s20
      %p97 = scmp.lt.s32.totalorder %s20, 3
      %p98 = pnand %p96, %p97
      %p99 = pneg %p98
      // Predicated region
      $region9: #{tpu_custom_call.1} parent=5 // pred_check
        _
      $region10: #{tpu_custom_call.1} parent=5 // pred_check_branch
        %101 = sbr.rel (%p98) target = $region12
      $region11: #{tpu_custom_call.1} parent=5 // pred_region
        %s102 = ssub.s32 %s20, 1
        // Predicated region
        $region13: #{tpu_custom_call.1} parent=11 // pred_check
          %p103 = pneg %p41
        $region14: #{tpu_custom_call.1} parent=11 // pred_check_branch
          %105 = sbr.rel (%p103) target = $region16
        $region15: #{tpu_custom_call.1} parent=11 // pred_region
          _
        $region16: #{tpu_custom_call.1} parent=11 // pred_fallthru
          _
        // Predicated region
        $region17: #{tpu_custom_call.1} parent=11 // pred_check
          %p106 = pneg %p62
        $region18: #{tpu_custom_call.1} parent=11 // pred_check_branch
          %108 = sbr.rel (%p106) target = $region20
        $region19: #{tpu_custom_call.1} parent=11 // pred_region
          _
        $region20: #{tpu_custom_call.1} parent=11 // pred_fallthru
          _
      $region12: #{tpu_custom_call.1} parent=5 // pred_fallthru
        _
      %p109 = scmp.lt.s32.totalorder %s20, 2
      // Predicated region
      $region21: #{tpu_custom_call.1} parent=5 // pred_check
        %p110 = pneg %p109
      $region22: #{tpu_custom_call.1} parent=5 // pred_check_branch
        %112 = sbr.rel (%p110) target = $region24
      $region23: #{tpu_custom_call.1} parent=5 // pred_region
        _
      $region24: #{tpu_custom_call.1} parent=5 // pred_fallthru
        _
      %p113 = scmp.le.s32.totalorder 1, %s20
      %p114 = scmp.lt.s32.totalorder %s20, 3
      %p115 = pnand %p113, %p114
      %p116 = pneg %p115
      // Predicated region
      $region25: #{tpu_custom_call.1} parent=5 // pred_check
        _
      $region26: #{tpu_custom_call.1} parent=5 // pred_check_branch
        %118 = sbr.rel (%p115) target = $region28
      $region27: #{tpu_custom_call.1} parent=5 // pred_region
        %s119 = ssub.s32 %s20, 1
        %p120 = pneg %p41
        %p121 = pneg %p38
        %p122 = pneg %p62
        %p123 = pneg %p59
        %p124 = pneg %p88
        %p125 = pneg %p85
        %s126 = sand.u32 %s75, 1
        %s127 = scalar_lea.sflag [#allocation6], %s126
        %s128 = sand.u32 %s75, 1
        %s129 = smul.addr %s128, 8
        %s130 = scalar_lea.vmem [#allocation5], %s129
        loop: start=0, step=1, limit=8
        $region29: #{tpu_custom_call.1} parent=27 // loop_pre_header
          _
        $region30: #{tpu_custom_call.1} parent=27 // loop_header
          %s132 = sphi 0, %s136
          %p133 = scmp.ge.s32.totalorder %s132, 8
        $region31: #{tpu_custom_call.1} parent=27 // loop_header_branch
          %135 = sbr.rel (%p133) target = $region35
        $region32: #{tpu_custom_call.1} parent=27 // loop_body
          %s137 = smul.u32 %s25, 8
          %s138 = sadd.s32 %s137, %s132
          %s139 = sld [smem:[#allocation4 + %s138]]
          %s140 = scalar_lea.vmem %s1, %s139
          %v141 = vld [vmem:[%s140] sm:$0x1]
          %s142 = scalar_lea.vmem [#allocation2], %s132
          %vm143 = vcmask 253952
          %144 = vst.msk [vmem:[%s142] sm:$0x1] %vm143, %v141
        $region33: #{tpu_custom_call.1} parent=27 // loop_footer
          %s136 = sadd.s32 1, %s132
        $region34: #{tpu_custom_call.1} parent=27 // loop_footer_branch
          %131 = sbr.rel target = $region30
        $region35: #{tpu_custom_call.1} parent=27 // loop_exit
          _
        %v145 = vld [vmem:[#allocation2] sm:$0xff]
        %v146 = vld [vmem:[%s2] sm:$0xff]
        %v147 = vadd.f32 %v145, %v146
        %vm148 = vcmask 261120
        %149 = vst.msk [vmem:[%s130] sm:$0xff] %vm148, %v147
        %s150 = sand.u32 %s75, 1
        %s151 = scalar_lea.sflag [#allocation6], %s150
        %s152 = sand.u32 %s75, 1
        %s153 = smul.addr %s152, 8
        %s154 = scalar_lea.vmem [#allocation5], %s153
        // Predicated region
        $region36: #{tpu_custom_call.1} parent=27 // pred_check
          %p155 = pneg %p85
        $region37: #{tpu_custom_call.1} parent=27 // pred_check_branch
          %157 = sbr.rel (%p155) target = $region39
        $region38: #{tpu_custom_call.1} parent=27 // pred_region
          %159 = vsyncadd %s151, 0
          %s160 = smul.addr %s25, 8
          %s161 = scalar_lea.hbm %s3, %s160
          %s163 = sshll.u32 %s154, 4
          %s164 = int_to_ptr.vmem [resolvable:$true] %s163
          %s165 = sshll.u32 %s161, 4
          %s166 = int_to_ptr.hbm [resolvable:$true] %s165
          %168 = dma.vmem_to_hbm [thread:$0]  %s164, 128, %s166, %s151
        $region39: #{tpu_custom_call.1} parent=27 // pred_fallthru
          _
      $region28: #{tpu_custom_call.1} parent=5 // pred_fallthru
        _
      %p169 = scmp.le.s32.totalorder 2, %s20
      // Predicated region
      $region40: #{tpu_custom_call.1} parent=5 // pred_check
        %p170 = pneg %p169
      $region41: #{tpu_custom_call.1} parent=5 // pred_check_branch
        %172 = sbr.rel (%p170) target = $region43
      $region42: #{tpu_custom_call.1} parent=5 // pred_region
        %s173 = ssub.s32 %s20, 2
        // Predicated region
        $region44: #{tpu_custom_call.1} parent=42 // pred_check
          %p174 = pneg %p91
        $region45: #{tpu_custom_call.1} parent=42 // pred_check_branch
          %176 = sbr.rel (%p174) target = $region47
        $region46: #{tpu_custom_call.1} parent=42 // pred_region
          %s177 = sand.u32 %s76, 1
          %s178 = scalar_lea.sflag [#allocation6], %s177
          %s179 = sand.u32 %s76, 1
          %s180 = smul.addr %s179, 8
          %s181 = scalar_lea.vmem [#allocation5], %s180
          %183 = dma.done %s178, 128
        $region47: #{tpu_custom_call.1} parent=42 // pred_fallthru
          _
      $region43: #{tpu_custom_call.1} parent=5 // pred_fallthru
        _
    $region6: #{tpu_custom_call.1} parent=1 // loop_footer
      %s24 = sadd.s32 1, %s20
    $region7: #{tpu_custom_call.1} parent=1 // loop_footer_branch
      %19 = sbr.rel target = $region3
    $region8: #{tpu_custom_call.1} parent=1 // loop_exit
      _
    %184 = vsyncpa [#allocation6], 1
    %s185 = scalar_lea.sflag [#allocation6], 1
    %186 = vsyncpa %s185, 1

</llo_original>
